<compile_context>
chip_gen: v7x
topology: tpu7x:2x2x1
jax: 0.10.0
libtpu: 0.0.40
codegen_flags: <defaults>
</compile_context>

<pallas_src>
import jax
import jax.numpy as jnp
from jax.experimental import pallas as pl
from jax.experimental.pallas import tpu as pltpu


_TARGET_BLOCK_BYTES = 4 * 1024 * 1024   # ~4 MiB per operand block
_VMEM_LIMIT_BYTES = 48 * 1024 * 1024    # safe on v5e/v6e (128 MiB) and v7x (64 MiB)
_MEGACORE_MIN_BYTES = 1 * 1024 * 1024   # split into >=2 blocks above this size


def _round_up(v: int, m: int) -> int:
    return ((v + m - 1) // m) * m


def _make_scale_kernel(scale: float, cast_to_f32: bool):
    # `scale` is a plain Python float -> traced as a literal, not a captured
    # array constant (the previous compile error).
    def kernel(x_ref, o_ref):
        x = x_ref[...]
        if cast_to_f32:
            # Integer inputs: promote to f32 so e.g. uint8 * (1/255) doesn't
            # truncate to zero (matches PyTorch int-tensor * float promotion).
            x = x.astype(jnp.float32)
        o_ref[...] = (x * scale).astype(o_ref.dtype)

    return kernel


def scale_forward(x: jax.Array, scale) -> jax.Array:
    """Elementwise x * scale via a Pallas TPU kernel. x may be any shape."""
    scale = float(scale)
    orig_shape = x.shape
    n = x.size

    # Mirror `torch_tensor * python_float`: float dtypes preserved (native
    # dtype multiply), integer/bool dtypes promote to float32.
    if jnp.issubdtype(x.dtype, jnp.floating):
        out_dtype = x.dtype
        cast_to_f32 = False
    else:
        out_dtype = jnp.dtype(jnp.float32)
        cast_to_f32 = True

    if n == 0:
        return jnp.zeros(orig_shape, dtype=out_dtype)

    kernel = _make_scale_kernel(scale, cast_to_f32)

    in_itemsize = jnp.dtype(x.dtype).itemsize
    out_itemsize = jnp.dtype(out_dtype).itemsize
    itemsize = max(in_itemsize, out_itemsize)
    total_bytes = n * itemsize

    compiler_params = pltpu.CompilerParams(
        dimension_semantics=("parallel",),
        vmem_limit_bytes=_VMEM_LIMIT_BYTES,
    )
    cost = pl.CostEstimate(
        flops=n,
        transcendentals=0,
        bytes_accessed=n * (in_itemsize + out_itemsize),
    )

    x_flat = jnp.ravel(x)

    # Widest lane width that divides n exactly -> lane-dense 2D slab, no pad.
    lanes = None
    for cand in (1024, 512, 256, 128):
        if n % cand == 0:
            lanes = cand
            break

    if lanes is not None:
        # --- Common path: lane-dense 2D slab, blocked along rows. ---
        rows = n // lanes
        block_rows = max(32, (_TARGET_BLOCK_BYTES // (lanes * itemsize)) // 32 * 32)
        if rows <= block_rows:
            if total_bytes > _MEGACORE_MIN_BYTES and rows >= 64:
                # Ensure >=2 blocks so both v7x TensorCores get work.
                block_rows = _round_up(pl.cdiv(rows, 2), 32)
            else:
                block_rows = rows  # single full-extent block (no (8,128) issue)
        grid = (pl.cdiv(rows, block_rows),)

        out2d = pl.pallas_call(
            kernel,
            out_shape=jax.ShapeDtypeStruct((rows, lanes), out_dtype),
            grid=grid,
            in_specs=[pl.BlockSpec((block_rows, lanes), lambda i: (i, 0))],
            out_specs=pl.BlockSpec((block_rows, lanes), lambda i: (i, 0)),
            compiler_params=compiler_params,
            cost_estimate=cost,
        )(x_flat.reshape(rows, lanes))
        return out2d.reshape(orig_shape)

    # --- Remainder path (n % 128 != 0): 1D blocks, masked edge block. ---
    # No jnp.pad / output slice: Pallas masks the OOB tail of the last block,
    # so this stays a single read + single write of the tensor.
    block_elems = max(1024, (_TARGET_BLOCK_BYTES // itemsize) // 1024 * 1024)
    if n <= block_elems:
        if total_bytes > _MEGACORE_MIN_BYTES and n >= 2048:
            block_elems = _round_up(pl.cdiv(n, 2), 1024)
        else:
            block_elems = n  # full-extent single block
    grid = (pl.cdiv(n, block_elems),)

    out1d = pl.pallas_call(
        kernel,
        out_shape=jax.ShapeDtypeStruct((n,), out_dtype),
        grid=grid,
        in_specs=[pl.BlockSpec((block_elems,), lambda i: (i,))],
        out_specs=pl.BlockSpec((block_elems,), lambda i: (i,)),
        compiler_params=compiler_params,
        cost_estimate=cost,
    )(x_flat)
    return out1d.reshape(orig_shape)


if __name__ == "__main__":
    key = jax.random.PRNGKey(0)
    scale = 1.0 / 255.0  # Scale(1/255) is the typical usage in the A2C script

    # Primary check: small NCHW float32 input (lane-dense 2D path).
    x = jax.random.normal(key, (2, 4, 16, 16), dtype=jnp.float32)
    out = jax.block_until_ready(scale_forward(x, scale))
    ref = x * scale
    assert out.shape == x.shape
    assert out.dtype == x.dtype
    assert jnp.allclose(out, ref, atol=1e-6, rtol=1e-6)

    # Integer input (typical uint8-frame usage pattern): promotes to float32.
    xi = jax.random.randint(jax.random.PRNGKey(1), (2, 3, 16, 16), 0, 256,
                            dtype=jnp.int32)
    outi = jax.block_until_ready(scale_forward(xi, scale))
    refi = xi.astype(jnp.float32) * scale
    assert outi.dtype == jnp.float32
    assert jnp.allclose(outi, refi, atol=1e-6, rtol=1e-6)

    # Awkward size (n % 128 != 0): exercises the 1D masked-edge-block path.
    x2 = jax.random.normal(jax.random.PRNGKey(2), (3, 5, 7), dtype=jnp.float32)
    out2 = jax.block_until_ready(scale_forward(x2, scale))
    ref2 = x2 * scale
    assert out2.shape == x2.shape
    assert jnp.allclose(out2, ref2, atol=1e-6, rtol=1e-6)

    print("KERNEL_OK")
</pallas_src>

<mosaic_0001>
module attributes {stable_mosaic.version = 11 : i64} {
  func.func @kernel(%arg0: i32, %arg1: memref<2x1024xf32, #tpu.memory_space<vmem>>, %arg2: memref<2x1024xf32, #tpu.memory_space<vmem>>) attributes {dimension_semantics = [#tpu.dimension_semantics<parallel>], iteration_bounds = array<i64: 1>, scalar_prefetch = 0 : i64, scratch_operands = 0 : i64, tpu.core_type = #tpu.core_type<tc>, window_params = [{transform_indices = @transform_0, window_bounds = array<i64: 2, 1024>}, {transform_indices = @transform_1, window_bounds = array<i64: 2, 1024>}]} {
    %c0 = arith.constant 0 : index
    %c0_0 = arith.constant 0 : index
    %0 = vector.load %arg1[%c0, %c0_0] : memref<2x1024xf32, #tpu.memory_space<vmem>>, vector<2x1024xf32>
    %cst = arith.constant 0.00392156886 : f32
    %1 = vector.broadcast %cst : f32 to vector<2x1024xf32>
    %2 = arith.mulf %0, %1 : vector<2x1024xf32>
    %c0_1 = arith.constant 0 : index
    %c0_2 = arith.constant 0 : index
    %3 = vector.load %arg2[%c0_1, %c0_2] : memref<2x1024xf32, #tpu.memory_space<vmem>>, vector<2x1024xf32>
    tpu.vector_store %arg2[%c0_1, %c0_2], %2 {strides = array<i32>} : memref<2x1024xf32, #tpu.memory_space<vmem>>, vector<2x1024xf32>,
    return
  }
  func.func @transform_0(%arg0: i32) -> (i32, i32) {
    %c0_i32 = arith.constant 0 : i32
    %c0_i32_0 = arith.constant 0 : i32
    return %arg0, %c0_i32 : i32, i32
  }
  func.func @transform_1(%arg0: i32) -> (i32, i32) {
    %c0_i32 = arith.constant 0 : i32
    %c0_i32_0 = arith.constant 0 : i32
    return %arg0, %c0_i32 : i32, i32
  }
}

</mosaic_0001>

<llo_original>
// kernel: tpu_custom_call.1
$region0: #{tpu_custom_call.1}
  #allocation0 [shape = 'u32[]', space=smem, size = 0x4, offset = 0x4, fixed_abs, tag = 'smem constant byte address 0x4 - core index']
  #allocation1 [shape = 'u32[144,128]{1,0:T(1,128)}', space=vmem, size = 0x12000, scoped, tag = 'internal scratch']
  %s0 = inlined_call_operand.hbm [shape: f32[2,1024], index: 0, kind: input, shape index: {}]
  %s1 = inlined_call_operand.hbm [shape: f32[2,1024], index: 1, kind: output, shape index: {}]
  %s2 = sld [smem:[#allocation0]]
  $region18: #{tpu_custom_call.1} parent=0
    _
  %s4 = ssub.s32 1, %s2
  %s5 = scalar_select 0, %s4, %s2
  $region1: #{tpu_custom_call.1} parent=0
    #allocation2 [shape = 'u8[8192]{0}', space=vmem, size = 0x2000, scoped, tag = 'input window, operand 0, single buffered']
    #allocation3 [shape = 's32[1]{0}', space=sflag, size = 0x4, scoped, tag = 'scoped memory for tpu_custom_call.1']
    #allocation4 [shape = 's32[1]{0}', space=sflag, size = 0x4, scoped, tag = 'scoped memory for tpu_custom_call.1']
    #allocation5 [shape = 'u8[8192]{0}', space=vmem, size = 0x2000, scoped, tag = 'output window, operand 0, single buffered']
    %6 = vsyncpa [#allocation3], 0
    %7 = vsyncpa [#allocation4], 0
    // Predicated region
    $region2: #{tpu_custom_call.1} parent=1 // pred_check
      _
    $region3: #{tpu_custom_call.1} parent=1 // pred_check_branch
      %9 = sbr.rel (0) target = $region5
    $region4: #{tpu_custom_call.1} parent=1 // pred_region
      %s11 = ssub.s32 256, 256
      %12 = vsyncadd [#allocation3], %s11
      %s14 = sshll.u32 [#allocation2], 4
      %s15 = int_to_ptr.vmem [resolvable:$true] %s14
      %17 = dma.hbm_to_vmem [thread:$0]  %s0, 256, %s15, [#allocation3]
    $region5: #{tpu_custom_call.1} parent=1 // pred_fallthru
      _
    // Predicated region
    $region6: #{tpu_custom_call.1} parent=1 // pred_check
      _
    $region7: #{tpu_custom_call.1} parent=1 // pred_check_branch
      %19 = sbr.rel (0) target = $region9
    $region8: #{tpu_custom_call.1} parent=1 // pred_region
      %20 = dma.done [#allocation3], 256
    $region9: #{tpu_custom_call.1} parent=1 // pred_fallthru
      _
    %v21 = vld [vmem:[#allocation2] sm:$0xff]
    %v22 = vld [vmem:[#allocation2 + $0x8] sm:$0xff]
    %v23 = vmul.f32 %v21, 0.003921569
    %v24 = vmul.f32 %v22, 0.003921569
    %25 = vst [vmem:[#allocation5] sm:$0xff] %v23
    %26 = vst [vmem:[#allocation5 + $0x8] sm:$0xff] %v24
    // Predicated region
    $region10: #{tpu_custom_call.1} parent=1 // pred_check
      _
    $region11: #{tpu_custom_call.1} parent=1 // pred_check_branch
      %28 = sbr.rel (0) target = $region13
    $region12: #{tpu_custom_call.1} parent=1 // pred_region
      %s30 = ssub.s32 256, 256
      %31 = vsyncadd [#allocation4], %s30
      %s33 = sshll.u32 [#allocation5], 4
      %s34 = int_to_ptr.vmem [resolvable:$true] %s33
      %36 = dma.vmem_to_hbm [thread:$0]  %s34, 256, %s1, [#allocation4]
    $region13: #{tpu_custom_call.1} parent=1 // pred_fallthru
      _
    // Predicated region
    $region14: #{tpu_custom_call.1} parent=1 // pred_check
      _
    $region15: #{tpu_custom_call.1} parent=1 // pred_check_branch
      %38 = sbr.rel (0) target = $region17
    $region16: #{tpu_custom_call.1} parent=1 // pred_region
      %39 = dma.done [#allocation4], 256
    $region17: #{tpu_custom_call.1} parent=1 // pred_fallthru
      _
    %40 = vsyncpa [#allocation3], 1
    %41 = vsyncpa [#allocation4], 1

</llo_original>
